<compile_context>
chip_gen: v5e
topology: v5e:2x2
jax: 0.10.0
libtpu: 0.0.40
codegen_flags: <defaults>
</compile_context>

<pallas_src>
import jax
import jax.numpy as jnp
from jax.experimental import pallas as pl
from jax.experimental.pallas import tpu as pltpu

KSIZE = 5
PAD = (KSIZE - 1) // 2


def _eca_kernel(w_ref, x_ref, out_ref, pad_ref):
    """Fused ECA channel gate for one image.

    w_ref:   SMEM (KSIZE,)        conv1d weights
    x_ref:   VMEM (1, C, H*W)     input block (spatial flattened onto the lane axis)
    out_ref: VMEM (1, C, H*W)     gated output block (aliases x in HBM)
    pad_ref: VMEM (C + 2*PAD, 1)  zero-padded pooled channel descriptor (tiny scratch)
    """
    x = x_ref[0]                                         # (C, HW)
    c_dim, hw = x.shape

    # Global average + max pooling over the spatial (lane) axis.  The conv is linear
    # and bias-free, so conv(avg) + conv(max) == conv(avg + max).
    pooled = (jnp.sum(x, axis=1, keepdims=True) * (1.0 / hw)
              + jnp.max(x, axis=1, keepdims=True))       # (C, 1)

    # Zero-padded channel vector for the 5-tap conv along the channel axis.
    pad_ref[...] = jnp.zeros_like(pad_ref)
    pad_ref[PAD:PAD + c_dim, :] = pooled

    # Hoist the 5 scalar weight loads out of the MAC chain, then 5 static
    # shift-and-MAC taps on a (C, 1) column (cross-correlation, like nn.Conv1d).
    w = [w_ref[k] for k in range(KSIZE)]
    acc = w[0] * pad_ref[0:c_dim, :]
    for k in range(1, KSIZE):
        acc = acc + w[k] * pad_ref[k:k + c_dim, :]

    gate = 1.0 / (1.0 + jnp.exp(-acc))                   # sigmoid, (C, 1); exp on EUP
    out_ref[0] = x * gate                                # lane-broadcast per channel


@jax.jit
def channel_gate(x, conv_w):
    """Pallas TPU implementation of ChannelGate.forward (ECA attention)."""
    N, C, H, W = x.shape
    HW = H * W
    xr = x.astype(jnp.float32).reshape(N, C, HW)         # lane-dense: H*W on lanes
    w_flat = conv_w.reshape(-1).astype(jnp.float32)      # (KSIZE,)

    out = pl.pallas_call(
        _eca_kernel,
        out_shape=jax.ShapeDtypeStruct((N, C, HW), jnp.float32),
        grid=(N,),
        in_specs=[
            pl.BlockSpec(memory_space=pltpu.MemorySpace.SMEM),   # conv weights (5,)
            pl.BlockSpec((1, C, HW), lambda n: (n, 0, 0)),       # x block
        ],
        out_specs=pl.BlockSpec((1, C, HW), lambda n: (n, 0, 0)),
        scratch_shapes=[pltpu.VMEM((C + 2 * PAD, 1), jnp.float32)],
        input_output_aliases={1: 0},                     # out = x * gate, in place
        compiler_params=pltpu.CompilerParams(
            dimension_semantics=("parallel",),
            # VMEM budget: in + out blocks double-buffered = 4 * C * HW * 4 bytes
            # plus the tiny padded scratch — well under 32 MiB at these shapes.
            vmem_limit_bytes=32 * 1024 * 1024,
        ),
    )(w_flat, xr)
    return out.reshape(N, C, H, W)


def reference(x, conv_w):
    """Pure-JAX mirror of the PyTorch ChannelGate.forward (ECA)."""
    w = conv_w.reshape(-1)                               # (K,)
    avg = jnp.mean(x, axis=(2, 3))                       # (N, C)
    mx = jnp.max(x, axis=(2, 3))                         # (N, C)

    def conv1d_c(v):                                     # conv over the channel dim, pad=PAD
        vp = jnp.pad(v, ((0, 0), (PAD, PAD)))
        return sum(w[k] * vp[:, k:k + v.shape[1]] for k in range(KSIZE))

    y = conv1d_c(avg) + conv1d_c(mx)                     # (N, C)
    gate = jax.nn.sigmoid(y)
    return x * gate[:, :, None, None]


if __name__ == "__main__":
    key = jax.random.PRNGKey(0)
    kx, kw = jax.random.split(key)
    N, C, H, W = 2, 4, 16, 16
    x = jax.random.normal(kx, (N, C, H, W), jnp.float32)

    # Conv1d(1, 1, kernel_size=5, padding=2, bias=False) weight: (1, 1, 5),
    # PyTorch default init: U(-1/sqrt(fan_in), 1/sqrt(fan_in)), fan_in = 1 * 5.
    bound = 1.0 / (KSIZE ** 0.5)
    conv_w = jax.random.uniform(kw, (1, 1, KSIZE), jnp.float32, -bound, bound)

    ref = reference(x, conv_w)           # compute before the (input-aliased) kernel call
    out = channel_gate(x, conv_w)
    out = jax.block_until_ready(out)

    assert out.shape == (N, C, H, W)
    err = float(jnp.max(jnp.abs(out - ref)))
    assert jnp.allclose(out, ref, atol=1e-4, rtol=1e-4), err
    print("KERNEL_OK")
</pallas_src>

<mosaic_0001>
module attributes {stable_mosaic.version = 11 : i64} {
  func.func @_eca_kernel(%arg0: i32, %arg1: memref<5xf32, #tpu.memory_space<smem>>, %arg2: memref<1x4x256xf32, #tpu.memory_space<vmem>>, %arg3: memref<1x4x256xf32, #tpu.memory_space<vmem>>, %arg4: memref<8x1xf32, #tpu.memory_space<vmem>>) attributes {dimension_semantics = [#tpu.dimension_semantics<parallel>], iteration_bounds = array<i64: 2>, scalar_prefetch = 0 : i64, scratch_operands = 1 : i64, tpu.core_type = #tpu.core_type<tc>, window_params = [{transform_indices = @transform_0, window_bounds = array<i64: 5>}, {transform_indices = @transform_1, window_bounds = array<i64: 1, 4, 256>}, {transform_indices = @transform_2, window_bounds = array<i64: 1, 4, 256>}]} {
    %c0 = arith.constant 0 : index
    %c0_0 = arith.constant 0 : index
    %c0_1 = arith.constant 0 : index
    %0 = vector.load %arg2[%c0, %c0_0, %c0_1] : memref<1x4x256xf32, #tpu.memory_space<vmem>>, vector<1x4x256xf32>
    %1 = vector.shape_cast %0 : vector<1x4x256xf32> to vector<4x256xf32>
    %cst = arith.constant dense<0.000000e+00> : vector<4xf32>
    %2 = vector.multi_reduction <add>, %1, %cst [1] : vector<4x256xf32> to vector<4xf32>
    %3 = vector.shape_cast %2 : vector<4xf32> to vector<4x1xf32>
    %cst_2 = arith.constant 3.906250e-03 : f32
    %4 = vector.broadcast %cst_2 : f32 to vector<4x1xf32>
    %5 = arith.mulf %3, %4 : vector<4x1xf32>
    %cst_3 = arith.constant dense<0xFF800000> : vector<4xf32>
    %6 = vector.multi_reduction <maximumf>, %1, %cst_3 [1] : vector<4x256xf32> to vector<4xf32>
    %7 = vector.shape_cast %6 : vector<4xf32> to vector<4x1xf32>
    %8 = arith.addf %5, %7 : vector<4x1xf32>
    %cst_4 = arith.constant 0.000000e+00 : f32
    %9 = vector.broadcast %cst_4 : f32 to vector<8x1xf32>
    %c0_5 = arith.constant 0 : index
    %c0_6 = arith.constant 0 : index
    %10 = vector.load %arg4[%c0_5, %c0_6] : memref<8x1xf32, #tpu.memory_space<vmem>>, vector<8x1xf32>
    tpu.vector_store %arg4[%c0_5, %c0_6], %9 {strides = array<i32>} : memref<8x1xf32, #tpu.memory_space<vmem>>, vector<8x1xf32>,
    %c2 = arith.constant 2 : index
    %c0_7 = arith.constant 0 : index
    %11 = vector.load %arg4[%c2, %c0_7] : memref<8x1xf32, #tpu.memory_space<vmem>>, vector<4x1xf32>
    tpu.vector_store %arg4[%c2, %c0_7], %8 {strides = array<i32>} : memref<8x1xf32, #tpu.memory_space<vmem>>, vector<4x1xf32>,
    %c0_8 = arith.constant 0 : index
    %12 = memref.load %arg1[%c0_8] : memref<5xf32, #tpu.memory_space<smem>>
    %c1 = arith.constant 1 : index
    %13 = memref.load %arg1[%c1] : memref<5xf32, #tpu.memory_space<smem>>
    %c2_9 = arith.constant 2 : index
    %14 = memref.load %arg1[%c2_9] : memref<5xf32, #tpu.memory_space<smem>>
    %c3 = arith.constant 3 : index
    %15 = memref.load %arg1[%c3] : memref<5xf32, #tpu.memory_space<smem>>
    %c4 = arith.constant 4 : index
    %16 = memref.load %arg1[%c4] : memref<5xf32, #tpu.memory_space<smem>>
    %c0_10 = arith.constant 0 : index
    %c0_11 = arith.constant 0 : index
    %17 = vector.load %arg4[%c0_10, %c0_11] : memref<8x1xf32, #tpu.memory_space<vmem>>, vector<4x1xf32>
    %18 = vector.broadcast %12 : f32 to vector<4x1xf32>
    %19 = arith.mulf %18, %17 : vector<4x1xf32>
    %c1_12 = arith.constant 1 : index
    %c0_13 = arith.constant 0 : index
    %20 = vector.load %arg4[%c1_12, %c0_13] : memref<8x1xf32, #tpu.memory_space<vmem>>, vector<4x1xf32>
    %21 = vector.broadcast %13 : f32 to vector<4x1xf32>
    %22 = arith.mulf %21, %20 : vector<4x1xf32>
    %23 = arith.addf %19, %22 : vector<4x1xf32>
    %c2_14 = arith.constant 2 : index
    %c0_15 = arith.constant 0 : index
    %24 = vector.load %arg4[%c2_14, %c0_15] : memref<8x1xf32, #tpu.memory_space<vmem>>, vector<4x1xf32>
    %25 = vector.broadcast %14 : f32 to vector<4x1xf32>
    %26 = arith.mulf %25, %24 : vector<4x1xf32>
    %27 = arith.addf %23, %26 : vector<4x1xf32>
    %c3_16 = arith.constant 3 : index
    %c0_17 = arith.constant 0 : index
    %28 = vector.load %arg4[%c3_16, %c0_17] : memref<8x1xf32, #tpu.memory_space<vmem>>, vector<4x1xf32>
    %29 = vector.broadcast %15 : f32 to vector<4x1xf32>
    %30 = arith.mulf %29, %28 : vector<4x1xf32>
    %31 = arith.addf %27, %30 : vector<4x1xf32>
    %c4_18 = arith.constant 4 : index
    %c0_19 = arith.constant 0 : index
    %32 = vector.load %arg4[%c4_18, %c0_19] : memref<8x1xf32, #tpu.memory_space<vmem>>, vector<4x1xf32>
    %33 = vector.broadcast %16 : f32 to vector<4x1xf32>
    %34 = arith.mulf %33, %32 : vector<4x1xf32>
    %35 = arith.addf %31, %34 : vector<4x1xf32>
    %cst_20 = arith.constant 0.000000e+00 : f32
    %36 = vector.broadcast %cst_20 : f32 to vector<4x1xf32>
    %37 = arith.subf %36, %35 : vector<4x1xf32>
    %38 = math.exp %37 : vector<4x1xf32>
    %cst_21 = arith.constant 1.000000e+00 : f32
    %39 = vector.broadcast %cst_21 : f32 to vector<4x1xf32>
    %40 = arith.addf %39, %38 : vector<4x1xf32>
    %cst_22 = arith.constant 1.000000e+00 : f32
    %41 = vector.broadcast %cst_22 : f32 to vector<4x1xf32>
    %42 = arith.divf %41, %40 : vector<4x1xf32>
    %43 = vector.broadcast %42 : vector<4x1xf32> to vector<4x256xf32>
    %44 = arith.mulf %1, %43 : vector<4x256xf32>
    %c0_23 = arith.constant 0 : index
    %c0_24 = arith.constant 0 : index
    %c0_25 = arith.constant 0 : index
    %45 = vector.load %arg3[%c0_23, %c0_24, %c0_25] : memref<1x4x256xf32, #tpu.memory_space<vmem>>, vector<1x4x256xf32>
    %46 = vector.shape_cast %45 : vector<1x4x256xf32> to vector<4x256xf32>
    %47 = vector.shape_cast %44 : vector<4x256xf32> to vector<1x4x256xf32>
    tpu.vector_store %arg3[%c0_23, %c0_24, %c0_25], %47 {strides = array<i32>} : memref<1x4x256xf32, #tpu.memory_space<vmem>>, vector<1x4x256xf32>,
    return
  }
  func.func @transform_0(%arg0: i32) -> i32 {
    %c0_i32 = arith.constant 0 : i32
    %c0_i32_0 = arith.constant 0 : i32
    return %c0_i32 : i32
  }
  func.func @transform_1(%arg0: i32) -> (i32, i32, i32) {
    %c0_i32 = arith.constant 0 : i32
    %c0_i32_0 = arith.constant 0 : i32
    %c0_i32_1 = arith.constant 0 : i32
    return %arg0, %c0_i32, %c0_i32_0 : i32, i32, i32
  }
  func.func @transform_2(%arg0: i32) -> (i32, i32, i32) {
    %c0_i32 = arith.constant 0 : i32
    %c0_i32_0 = arith.constant 0 : i32
    %c0_i32_1 = arith.constant 0 : i32
    return %arg0, %c0_i32, %c0_i32_0 : i32, i32, i32
  }
}

</mosaic_0001>

<llo_original>
// kernel: channel_gate.1
$region0: #{channel_gate.1}
  #allocation0 [shape = 'u32[]', space=smem, size = 0x4, offset = 0x4, fixed_abs, tag = 'smem constant byte address 0x4 - core index']
  #allocation1 [shape = 'u32[72,128]{1,0:T(1,128)}', space=vmem, size = 0x9000, scoped, tag = 'internal scratch']
  #allocation2 [shape = 'f32[8,1]{1,0:T(8,128)}', space=vmem, size = 0x1000, scoped, tag = 'scratch operand']
  %s0 = inlined_call_operand.vmem [shape: f32[5], index: 0, kind: input, shape index: {}]
  %s1 = inlined_call_operand.vmem [shape: f32[2,4,256], index: 1, kind: input, shape index: {}, may-alias: {1,2}]
  %s2 = inlined_call_operand.vmem [shape: f32[2,4,256], index: 2, kind: output, shape index: {}, may-alias: {1,2}]
  %s3 = sld [smem:[#allocation0]]
  $region45: #{channel_gate.1} parent=0
    _
  %s5 = ssub.s32 1, %s3
  %s6 = scalar_select 0, %s5, %s3
  $region1: #{channel_gate.1} parent=0
    #allocation3 [shape = 'u8[512]{0}', space=smem, size = 0x200, scoped, tag = 'input window, operand 0, single buffered']
    #allocation4 [shape = 's32[2]{0}', space=sflag, size = 0x8, scoped, tag = 'scoped memory for channel_gate.1']
    %7 = vsyncpa [#allocation4], 0
    loop: start=0, step=1, limit=4
    $region2: #{channel_gate.1} parent=1 // loop_pre_header
      _
    $region3: #{channel_gate.1} parent=1 // loop_header
      %s9 = sphi 0, %s13
      %p10 = scmp.ge.s32.totalorder %s9, 4
      %s17 = sphi 0, %s17
      %s19 = sphi 0, %s17
      %s20 = sphi 0, %s19
      %s34 = sphi 0, %s20
      %s40 = sphi 0, %s42
      %s43 = sphi 0, %s40
      %s44 = sphi 0, %s43
      %s60 = sphi 0, %s44
      %s66 = sphi 0, %s68
      %s69 = sphi 0, %s66
      %s70 = sphi 0, %s69
      %s86 = sphi 0, %s70
    $region4: #{channel_gate.1} parent=1 // loop_header_branch
      %12 = sbr.rel (%p10) target = $region8
    $region5: #{channel_gate.1} parent=1 // loop_body
      %s14 = ssub.s32 %s9, 1
      %s15 = ssub.s32 %s9, 2
      %s16 = sadd.s32 %s9, 1
      %s18 = sadd.s32 %s17, 1
      %p21 = scmp.eq.s32.totalorder %s9, 1
      %p22 = scmp.ne.s32.totalorder %s17, %s19
      %p23 = scmp.eq.s32.totalorder %s9, 0
      %p24 = por %p22, %p23
      %p25 = scmp.ne.s32.totalorder %s17, %s19
      %p26 = scmp.eq.s32.totalorder %s14, 1
      %p27 = por %p25, %p26
      %p28 = scmp.ne.s32.totalorder %s19, %s20
      %p29 = scmp.eq.s32.totalorder %s14, 0
      %p30 = por %p28, %p29
      %p31 = scmp.ne.s32.totalorder %s19, %s20
      %p32 = scmp.eq.s32.totalorder %s15, 1
      %p33 = por %p31, %p32
      %p35 = scmp.ne.s32.totalorder %s20, %s34
      %p36 = scmp.eq.s32.totalorder %s15, 0
      %p37 = por %p35, %p36
      %s38 = ssub.s32 %s9, %s16
      %p39 = scmp.eq.s32.totalorder %s38, 0
      %s41 = sadd.s32 %s40, 1
      %s42 = scalar_select %p39, %s40, %s41
      %p45 = pneg %p39
      %p46 = scmp.eq.s32.totalorder %s9, 1
      %p47 = por %p45, %p46
      %p48 = scmp.ne.s32.totalorder %s40, %s43
      %p49 = scmp.eq.s32.totalorder %s9, 0
      %p50 = por %p48, %p49
      %p51 = scmp.ne.s32.totalorder %s40, %s43
      %p52 = scmp.eq.s32.totalorder %s14, 1
      %p53 = por %p51, %p52
      %p54 = scmp.ne.s32.totalorder %s43, %s44
      %p55 = scmp.eq.s32.totalorder %s14, 0
      %p56 = por %p54, %p55
      %p57 = scmp.ne.s32.totalorder %s43, %s44
      %p58 = scmp.eq.s32.totalorder %s15, 1
      %p59 = por %p57, %p58
      %p61 = scmp.ne.s32.totalorder %s44, %s60
      %p62 = scmp.eq.s32.totalorder %s15, 0
      %p63 = por %p61, %p62
      %s64 = ssub.s32 %s9, %s16
      %p65 = scmp.eq.s32.totalorder %s64, 0
      %s67 = sadd.s32 %s66, 1
      %s68 = scalar_select %p65, %s66, %s67
      %p71 = pneg %p65
      %p72 = scmp.eq.s32.totalorder %s9, 1
      %p73 = por %p71, %p72
      %p74 = scmp.ne.s32.totalorder %s66, %s69
      %p75 = scmp.eq.s32.totalorder %s9, 0
      %p76 = por %p74, %p75
      %p77 = scmp.ne.s32.totalorder %s66, %s69
      %p78 = scmp.eq.s32.totalorder %s14, 1
      %p79 = por %p77, %p78
      %p80 = scmp.ne.s32.totalorder %s69, %s70
      %p81 = scmp.eq.s32.totalorder %s14, 0
      %p82 = por %p80, %p81
      %p83 = scmp.ne.s32.totalorder %s69, %s70
      %p84 = scmp.eq.s32.totalorder %s15, 1
      %p85 = por %p83, %p84
      %p87 = scmp.ne.s32.totalorder %s70, %s86
      %p88 = scmp.eq.s32.totalorder %s15, 0
      %p89 = por %p87, %p88
      %p90 = scmp.le.s32.totalorder 1, %s9
      %p91 = scmp.lt.s32.totalorder %s9, 3
      %p92 = pnand %p90, %p91
      %p93 = pneg %p92
      // Predicated region
      $region9: #{channel_gate.1} parent=5 // pred_check
        _
      $region10: #{channel_gate.1} parent=5 // pred_check_branch
        %95 = sbr.rel (%p92) target = $region12
      $region11: #{channel_gate.1} parent=5 // pred_region
        %s96 = ssub.s32 %s9, 1
        // Predicated region
        $region13: #{channel_gate.1} parent=11 // pred_check
          %p97 = pneg %p30
        $region14: #{channel_gate.1} parent=11 // pred_check_branch
          %99 = sbr.rel (%p97) target = $region16
        $region15: #{channel_gate.1} parent=11 // pred_region
          %101 = vsyncadd [#allocation4], 0
          %s103 = sshll.u32 %s0, 4
          %s104 = int_to_ptr.vmem [resolvable:$true] %s103
          %106 = dma.vmem_to_smem %s104, 16, [#allocation3], [#allocation4]
        $region16: #{channel_gate.1} parent=11 // pred_fallthru
          _
      $region12: #{channel_gate.1} parent=5 // pred_fallthru
        _
      %p107 = scmp.lt.s32.totalorder %s9, 2
      // Predicated region
      $region17: #{channel_gate.1} parent=5 // pred_check
        %p108 = pneg %p107
      $region18: #{channel_gate.1} parent=5 // pred_check_branch
        %110 = sbr.rel (%p108) target = $region20
      $region19: #{channel_gate.1} parent=5 // pred_region
        // Predicated region
        $region21: #{channel_gate.1} parent=19 // pred_check
          %p111 = pneg %p50
        $region22: #{channel_gate.1} parent=19 // pred_check_branch
          %113 = sbr.rel (%p111) target = $region24
        $region23: #{channel_gate.1} parent=19 // pred_region
          %p114 = scmp.lt.s32.totalorder %s9, 1
          %s115 = scalar_select %p114, %s9, 1
          %s116 = smul.addr %s115, 2
          %s117 = smul.addr %s116, 4
          %s118 = scalar_lea.vmem %s1, %s117
        $region24: #{channel_gate.1} parent=19 // pred_fallthru
          _
      $region20: #{channel_gate.1} parent=5 // pred_fallthru
        _
      %p119 = scmp.le.s32.totalorder 1, %s9
      %p120 = scmp.lt.s32.totalorder %s9, 3
      %p121 = pnand %p119, %p120
      %p122 = pneg %p121
      // Predicated region
      $region25: #{channel_gate.1} parent=5 // pred_check
        _
      $region26: #{channel_gate.1} parent=5 // pred_check_branch
        %124 = sbr.rel (%p121) target = $region28
      $region27: #{channel_gate.1} parent=5 // pred_region
        %s125 = ssub.s32 %s9, 1
        // Predicated region
        $region29: #{channel_gate.1} parent=27 // pred_check
          %p126 = pneg %p30
        $region30: #{channel_gate.1} parent=27 // pred_check_branch
          %128 = sbr.rel (%p126) target = $region32
        $region31: #{channel_gate.1} parent=27 // pred_region
          %130 = dma.done [#allocation4], 16
        $region32: #{channel_gate.1} parent=27 // pred_fallthru
          _
        %131 = sfence
        %p132 = pneg %p30
        %p133 = pneg %p27
        %p134 = scmp.lt.s32.totalorder %s14, 1
        %s135 = scalar_select %p134, %s14, 1
        %s136 = smul.addr %s135, 2
        %s137 = smul.addr %s136, 4
        %s138 = scalar_lea.vmem %s1, %s137
        %p139 = pneg %p56
        %p140 = pneg %p53
        %p141 = pneg %p82
        %p142 = pneg %p79
        %p143 = scmp.lt.s32.totalorder %s14, 1
        %s144 = scalar_select %p143, %s14, 1
        %s145 = smul.addr %s144, 2
        %s146 = smul.addr %s145, 4
        %s147 = scalar_lea.vmem %s2, %s146
        %p148 = scmp.lt.s32.totalorder %s14, 1
        %s149 = scalar_select %p148, %s14, 1
        %s150 = smul.addr %s149, 2
        %s151 = smul.addr %s150, 4
        %s152 = scalar_lea.vmem %s1, %s151
        %p153 = scmp.lt.s32.totalorder %s14, 1
        %s154 = scalar_select %p153, %s14, 1
        %s155 = smul.addr %s154, 2
        %s156 = smul.addr %s155, 4
        %s157 = scalar_lea.vmem %s2, %s156
        %v158 = vld [vmem:[%s152] sm:$0xff]
        %160 = vst [vmem:[#allocation1] ss:$2 sm:$0xff] %v158
        %v161 = vld.sshfl [vmem:[#allocation1] sm:$0xff pattern:$0x75316420]
        %v162 = vld.sshfl [vmem:[#allocation1 + $0x8] sm:$0xff pattern:$0x75316420]
        %vm165 = vcmask 1043456
        %v166 = vsel %vm165, %v161, 0.0
        %v167 = vsel %vm165, %v162, 0.0
        %v168 = vadd.f32 %v166, %v167
        %169 = vadd.xlane.f32.xlu0 %v168
        %v170 = vpop.xlane.xlu0 %169
        %v171 = vmul.f32 %v170, 0.00390625
        %172 = vst [vmem:[#allocation1] ss:$2 sm:$0xff] %v158
        %v173 = vld.sshfl [vmem:[#allocation1] sm:$0xff pattern:$0x75316420]
        %v174 = vld.sshfl [vmem:[#allocation1 + $0x8] sm:$0xff pattern:$0x75316420]
        %v177 = vsel %vm165, %v173, -inf
        %v178 = vsel %vm165, %v174, -inf
        %v179 = vmax.f32 %v177, %v178
        %180 = vmax.xlane.f32.xlu0 %v179
        %v181 = vpop.xlane.xlu0 %180
        %v182 = vadd.f32 %v171, %v181
        %vm183 = vcmask 7168
        %184 = vst.msk [vmem:[#allocation2] sm:$0xff] %vm183, 0.0
        %vm185 = vcmask 3072
        %186 = vst.msk [vmem:[#allocation2 + $0x2] sm:$0xf] %vm185, %v182
        %s187 = sld [smem:[#allocation3]]
        %s188 = sld [smem:[#allocation3 + $0x1]]
        %s189 = sld [smem:[#allocation3 + $0x2]]
        %s190 = sld [smem:[#allocation3 + $0x3]]
        %s191 = sld [smem:[#allocation3 + $0x4]]
        %v192 = vld [vmem:[#allocation2] sm:$0xf]
        %v193 = vstv %s187
        %v194 = vmul.f32 %v193, %v192
        %v195 = vld [vmem:[#allocation2 + $0x1] sm:$0xf]
        %v196 = vstv %s188
        %v197 = vmul.f32 %v196, %v195
        %v198 = vadd.f32 %v194, %v197
        %v199 = vld [vmem:[#allocation2 + $0x2] sm:$0xf]
        %v200 = vstv %s189
        %v201 = vmul.f32 %v200, %v199
        %v202 = vadd.f32 %v198, %v201
        %v203 = vld [vmem:[#allocation2 + $0x3] sm:$0xf]
        %v204 = vstv %s190
        %v205 = vmul.f32 %v204, %v203
        %v206 = vadd.f32 %v202, %v205
        %v207 = vld [vmem:[#allocation2 + $0x4] sm:$0xf]
        %v208 = vstv %s191
        %v209 = vmul.f32 %v208, %v207
        %v210 = vadd.f32 %v206, %v209
        %v211 = vsub.f32 0.0, %v210
        %v212 = vmul.f32 %v211, 1.442695
        %v213 = vpow.pop %v212
        %v214 = vadd.f32 %v213, 1.0
        %v215 = vrcp.pop %v214
        %v216 = vmul.f32 %v214, %v215
        %v217 = vsub.f32 1.0, %v216
        %v218 = vmul.f32 %v215, %v217
        %v219 = vadd.f32 %v215, %v218
        %vm220 = vweird.f32 %v214
        %vm221 = vweird.f32 %v215
        %vm222 = vmor %vm220, %vm221
        %v223 = vsel %vm222, %v215, %v219
        %v224 = vand.u32 2147483647, %v214
        %vm225 = vcmp.eq.f32.partialorder %v224, 8.507059e+37
        %v226 = vand.u32 %v214, 2147483648
        %v227 = vor.u32 1.1754944e-38, %v226
        %v228 = vsel %vm225, %v227, %v223
        %v229 = vmul.f32 1.0, %v228
        %231 = vset.pattern.permute.xlu0 0
        %232 = vperm.xlu0 %231, %v229
        %v233 = vpop.permute.xlu0 %232
        %v235 = vunpack.c.l.s4 839922192
        %v236 = vunpack.c.0.s8 %v235
        %v237 = vperm.slane %v233, %v236
        %v239 = vmul.f32 %v158, %v237
        %240 = vst [vmem:[%s157] sm:$0xff] %v239
        %p241 = scmp.lt.s32.totalorder %s14, 1
        %s242 = scalar_select %p241, %s14, 1
        %s243 = smul.addr %s242, 2
        %s244 = smul.addr %s243, 4
        %s245 = scalar_lea.vmem %s2, %s244
        // Predicated region
        $region33: #{channel_gate.1} parent=27 // pred_check
          %p246 = pneg %p79
        $region34: #{channel_gate.1} parent=27 // pred_check_branch
          %248 = sbr.rel (%p246) target = $region36
        $region35: #{channel_gate.1} parent=27 // pred_region
          _
        $region36: #{channel_gate.1} parent=27 // pred_fallthru
          _
      $region28: #{channel_gate.1} parent=5 // pred_fallthru
        _
      %p249 = scmp.le.s32.totalorder 2, %s9
      // Predicated region
      $region37: #{channel_gate.1} parent=5 // pred_check
        %p250 = pneg %p249
      $region38: #{channel_gate.1} parent=5 // pred_check_branch
        %252 = sbr.rel (%p250) target = $region40
      $region39: #{channel_gate.1} parent=5 // pred_region
        %s253 = ssub.s32 %s9, 2
        // Predicated region
        $region41: #{channel_gate.1} parent=39 // pred_check
          %p254 = pneg %p85
        $region42: #{channel_gate.1} parent=39 // pred_check_branch
          %256 = sbr.rel (%p254) target = $region44
        $region43: #{channel_gate.1} parent=39 // pred_region
          %p257 = scmp.lt.s32.totalorder %s15, 1
          %s258 = scalar_select %p257, %s15, 1
          %s259 = smul.addr %s258, 2
          %s260 = smul.addr %s259, 4
          %s261 = scalar_lea.vmem %s2, %s260
        $region44: #{channel_gate.1} parent=39 // pred_fallthru
          _
      $region40: #{channel_gate.1} parent=5 // pred_fallthru
        _
    $region6: #{channel_gate.1} parent=1 // loop_footer
      %s13 = sadd.s32 1, %s9
    $region7: #{channel_gate.1} parent=1 // loop_footer_branch
      %8 = sbr.rel target = $region3
    $region8: #{channel_gate.1} parent=1 // loop_exit
      _
    %262 = vsyncpa [#allocation4], 1
    %s263 = scalar_lea.sflag [#allocation4], 1
    %264 = vsyncpa %s263, 1

</llo_original>
